<compile_context>
chip_gen: v6e
topology: v6e:2x2x1
jax: 0.10.0
libtpu: 0.0.40
codegen_flags: <defaults>
</compile_context>

<pallas_src>
import math

import jax
import jax.numpy as jnp
from jax.experimental import pallas as pl
from jax.experimental.pallas import tpu as pltpu


def _round_up(n, m):
    return ((n + m - 1) // m) * m


def _gwl_kernel(x_ref, w_ref, b_ref, o_ref):
    # x_ref: (TB, C, H)   w_ref: (1, C, H)   b_ref: (1, C)   o_ref: (TB, C)
    # Upcast to f32 before the multiply so the math matches the PyTorch f32
    # reference; the op is HBM-bound so the extra VPU work is free.
    x = x_ref[...].astype(jnp.float32)
    w = w_ref[...].astype(jnp.float32)            # broadcasts over batch
    s = jnp.sum(x * w, axis=-1)                   # (TB, C), f32 accumulation
    o_ref[...] = (s + b_ref[...].astype(jnp.float32)).astype(o_ref.dtype)


def _choose_tile_b(B, C, H, itemsize):
    """Pick a batch tile size: ~8 MiB x tiles, bounded by a cross-gen VMEM budget."""
    # Sublane packing of the dtype so output blocks cover whole packed tiles.
    pack = {1: 32, 2: 16}.get(itemsize, 8)
    per_row = C * H * itemsize                     # bytes of one batch row of x

    # ~8 MiB per x tile: at 3.2 TB/s (v7x) that's ~2.5 us/step, so the
    # ~0.35 us fixed per-step overhead stays <15%; v6e/v5e have more slack.
    target = 8 * 1024 * 1024
    tile_b = max(pack, (target // per_row) // pack * pack)

    # Cross-generation VMEM budget (v7x: 64 MiB physical, 32 MiB default
    # scoped): 2 x-buffers + (worst case) 2 W copies + slack <= 48 MiB.
    budget = 48 * 1024 * 1024
    w_bytes = C * H * itemsize
    avail = budget - 2 * w_bytes - 2 * 1024 * 1024
    if avail > 2 * per_row * pack:
        tile_b = min(tile_b, max(pack, (avail // (2 * per_row)) // pack * pack))
    # else: even the minimum tile exceeds the budget; vmem_limit_bytes below is
    # raised to whatever is actually needed.
    # TODO(synk): for extreme C*H (many-MiB per batch row) add a second
    # "arbitrary" grid axis over hidden_dim with an f32 accumulator scratch.

    # Megacore (v7x): keep at least 2 grid steps so both TensorCores get work.
    if B >= 2 * pack:
        tile_b = min(tile_b, _round_up(-(-B // 2), pack))
    tile_b = min(tile_b, _round_up(B, pack))
    return tile_b


def groupwise_linear(x, W, b, *, tile_b=None):
    """out[b, c] = sum_h W[0, c, h] * x[b, c, h] + b[0, c]"""
    B, C, H = x.shape
    assert W.shape == (1, C, H) and b.shape == (1, C)

    itemsize = jnp.dtype(x.dtype).itemsize
    if tile_b is None:
        tile_b = _choose_tile_b(B, C, H, itemsize)

    # Last block may be partial; Pallas masks out-of-bounds output rows.
    grid = (pl.cdiv(B, tile_b),)

    # Explicit VMEM budget: 2 x-buffers + up to 2 W copies + b + 2 out buffers.
    w_bytes = C * H * jnp.dtype(W.dtype).itemsize
    b_bytes = C * jnp.dtype(b.dtype).itemsize
    needed = (2 * tile_b * C * H * itemsize
              + 2 * w_bytes
              + 2 * b_bytes
              + 2 * tile_b * C * itemsize
              + 2 * 1024 * 1024)                   # headroom
    vmem_limit = int(max(32 * 1024 * 1024, needed))

    cost = pl.CostEstimate(
        flops=int(2 * B * C * H),
        transcendentals=0,
        bytes_accessed=int(B * C * H * itemsize + w_bytes + b_bytes
                           + B * C * itemsize),
    )

    x_spec = pl.BlockSpec((tile_b, C, H), lambda i: (i, 0, 0))
    out_spec = pl.BlockSpec((tile_b, C), lambda i: (i, 0))

    def _call(w_spec, b_spec):
        return pl.pallas_call(
            _gwl_kernel,
            out_shape=jax.ShapeDtypeStruct((B, C), x.dtype),
            grid=grid,
            in_specs=[x_spec, w_spec, b_spec],
            out_specs=out_spec,
            compiler_params=pltpu.CompilerParams(
                dimension_semantics=("parallel",),   # shard batch across TCs
                vmem_limit_bytes=vmem_limit,
            ),
            cost_estimate=cost,
        )(x, W, b)

    try:
        # Grid-invariant W / b: constant index_map (DMA'd once) and single
        # buffered, halving their VMEM footprint.
        out = _call(
            pl.BlockSpec((1, C, H), lambda i: (0, 0, 0),
                         pipeline_mode=pl.Buffered(1)),
            pl.BlockSpec((1, C), lambda i: (0, 0),
                         pipeline_mode=pl.Buffered(1)),
        )
    except Exception:
        # Fallback if this JAX build rejects Buffered(1) on pallas_call specs.
        out = _call(
            pl.BlockSpec((1, C, H), lambda i: (0, 0, 0)),
            pl.BlockSpec((1, C), lambda i: (0, 0)),
        )
    return out


def init_params(key, num_class, hidden_dim, dtype=jnp.float32):
    # Matches reset_parameters(): uniform(-stdv, stdv), stdv = 1/sqrt(hidden_dim)
    stdv = 1.0 / math.sqrt(hidden_dim)
    kw, kb = jax.random.split(key)
    W = jax.random.uniform(kw, (1, num_class, hidden_dim), dtype,
                           minval=-stdv, maxval=stdv)
    b = jax.random.uniform(kb, (1, num_class), dtype,
                           minval=-stdv, maxval=stdv)
    return W, b


if __name__ == "__main__":
    key = jax.random.PRNGKey(0)
    k_x, k_p = jax.random.split(key)

    batch, num_class, hidden_dim = 2, 8, 32
    x = jax.random.normal(k_x, (batch, num_class, hidden_dim), jnp.float32)
    W, b = init_params(k_p, num_class, hidden_dim)

    out = jax.block_until_ready(groupwise_linear(x, W, b))

    # Pure-JAX reference check.
    ref = jnp.sum(W * x, axis=-1) + b
    assert out.shape == (batch, num_class)
    assert jnp.allclose(out, ref, atol=1e-5, rtol=1e-5)

    # Also exercise a non-divisible batch (partial last block, masked store).
    x2 = jax.random.normal(k_x, (11, num_class, hidden_dim), jnp.float32)
    out2 = jax.block_until_ready(groupwise_linear(x2, W, b, tile_b=8))
    ref2 = jnp.sum(W * x2, axis=-1) + b
    assert out2.shape == (11, num_class)
    assert jnp.allclose(out2, ref2, atol=1e-5, rtol=1e-5)

    print("KERNEL_OK")
</pallas_src>

<mosaic_0001>
module attributes {stable_mosaic.version = 11 : i64} {
  func.func @_gwl_kernel(%arg0: i32, %arg1: memref<8x8x32xf32, #tpu.memory_space<vmem>>, %arg2: memref<1x8x32xf32, #tpu.memory_space<vmem>>, %arg3: memref<1x8xf32, #tpu.memory_space<vmem>>, %arg4: memref<8x8xf32, #tpu.memory_space<vmem>>) attributes {dimension_semantics = [#tpu.dimension_semantics<parallel>], iteration_bounds = array<i64: 1>, scalar_prefetch = 0 : i64, scratch_operands = 0 : i64, tpu.core_type = #tpu.core_type<tc>, window_params = [{transform_indices = @transform_0, window_bounds = array<i64: 8, 8, 32>}, {pipeline_mode = #tpu.pipeline_mode<synchronous>, transform_indices = @transform_1, window_bounds = array<i64: 1, 8, 32>}, {pipeline_mode = #tpu.pipeline_mode<synchronous>, transform_indices = @transform_2, window_bounds = array<i64: 1, 8>}, {transform_indices = @transform_3, window_bounds = array<i64: 8, 8>}]} {
    %c0 = arith.constant 0 : index
    %c0_0 = arith.constant 0 : index
    %c0_1 = arith.constant 0 : index
    %0 = vector.load %arg1[%c0, %c0_0, %c0_1] : memref<8x8x32xf32, #tpu.memory_space<vmem>>, vector<8x8x32xf32>
    %c0_2 = arith.constant 0 : index
    %c0_3 = arith.constant 0 : index
    %c0_4 = arith.constant 0 : index
    %1 = vector.load %arg2[%c0_2, %c0_3, %c0_4] : memref<1x8x32xf32, #tpu.memory_space<vmem>>, vector<1x8x32xf32>
    %2 = vector.broadcast %1 : vector<1x8x32xf32> to vector<8x8x32xf32>
    %3 = arith.mulf %0, %2 : vector<8x8x32xf32>
    %cst = arith.constant dense<0.000000e+00> : vector<8x8xf32>
    %4 = vector.multi_reduction <add>, %3, %cst [2] : vector<8x8x32xf32> to vector<8x8xf32>
    %c0_5 = arith.constant 0 : index
    %c0_6 = arith.constant 0 : index
    %5 = vector.load %arg3[%c0_5, %c0_6] : memref<1x8xf32, #tpu.memory_space<vmem>>, vector<1x8xf32>
    %6 = vector.broadcast %5 : vector<1x8xf32> to vector<8x8xf32>
    %7 = arith.addf %4, %6 : vector<8x8xf32>
    %c0_7 = arith.constant 0 : index
    %c0_8 = arith.constant 0 : index
    %8 = vector.load %arg4[%c0_7, %c0_8] : memref<8x8xf32, #tpu.memory_space<vmem>>, vector<8x8xf32>
    tpu.vector_store %arg4[%c0_7, %c0_8], %7 {strides = array<i32>} : memref<8x8xf32, #tpu.memory_space<vmem>>, vector<8x8xf32>,
    return
  }
  func.func @transform_0(%arg0: i32) -> (i32, i32, i32) {
    %c0_i32 = arith.constant 0 : i32
    %c0_i32_0 = arith.constant 0 : i32
    %c0_i32_1 = arith.constant 0 : i32
    return %arg0, %c0_i32, %c0_i32_0 : i32, i32, i32
  }
  func.func @transform_1(%arg0: i32) -> (i32, i32, i32) {
    %c0_i32 = arith.constant 0 : i32
    %c0_i32_0 = arith.constant 0 : i32
    %c0_i32_1 = arith.constant 0 : i32
    %c0_i32_2 = arith.constant 0 : i32
    return %c0_i32, %c0_i32_0, %c0_i32_1 : i32, i32, i32
  }
  func.func @transform_2(%arg0: i32) -> (i32, i32) {
    %c0_i32 = arith.constant 0 : i32
    %c0_i32_0 = arith.constant 0 : i32
    %c0_i32_1 = arith.constant 0 : i32
    return %c0_i32, %c0_i32_0 : i32, i32
  }
  func.func @transform_3(%arg0: i32) -> (i32, i32) {
    %c0_i32 = arith.constant 0 : i32
    %c0_i32_0 = arith.constant 0 : i32
    return %arg0, %c0_i32 : i32, i32
  }
}

module attributes {stable_mosaic.version = 11 : i64} {
  func.func @_gwl_kernel(%arg0: i32, %arg1: memref<8x8x32xf32, #tpu.memory_space<vmem>>, %arg2: memref<1x8x32xf32, #tpu.memory_space<vmem>>, %arg3: memref<1x8xf32, #tpu.memory_space<vmem>>, %arg4: memref<8x8xf32, #tpu.memory_space<vmem>>) attributes {dimension_semantics = [#tpu.dimension_semantics<parallel>], iteration_bounds = array<i64: 1>, scalar_prefetch = 0 : i64, scratch_operands = 0 : i64, tpu.core_type = #tpu.core_type<tc>, window_params = [{transform_indices = @transform_0, window_bounds = array<i64: 8, 8, 32>}, {pipeline_mode = #tpu.pipeline_mode<synchronous>, transform_indices = @transform_1, window_bounds = array<i64: 1, 8, 32>}, {pipeline_mode = #tpu.pipeline_mode<synchronous>, transform_indices = @transform_2, window_bounds = array<i64: 1, 8>}, {transform_indices = @transform_3, window_bounds = array<i64: 8, 8>}]} {
    %c0 = arith.constant 0 : index
    %c0_0 = arith.constant 0 : index
    %c0_1 = arith.constant 0 : index
    %0 = vector.load %arg1[%c0, %c0_0, %c0_1] : memref<8x8x32xf32, #tpu.memory_space<vmem>>, vector<8x8x32xf32>
    %c0_2 = arith.constant 0 : index
    %c0_3 = arith.constant 0 : index
    %c0_4 = arith.constant 0 : index
    %1 = vector.load %arg2[%c0_2, %c0_3, %c0_4] : memref<1x8x32xf32, #tpu.memory_space<vmem>>, vector<1x8x32xf32>
    %2 = vector.broadcast %1 : vector<1x8x32xf32> to vector<8x8x32xf32>
    %3 = arith.mulf %0, %2 : vector<8x8x32xf32>
    %cst = arith.constant dense<0.000000e+00> : vector<8x8xf32>
    %4 = vector.multi_reduction <add>, %3, %cst [2] : vector<8x8x32xf32> to vector<8x8xf32>
    %c0_5 = arith.constant 0 : index
    %c0_6 = arith.constant 0 : index
    %5 = vector.load %arg3[%c0_5, %c0_6] : memref<1x8xf32, #tpu.memory_space<vmem>>, vector<1x8xf32>
    %6 = vector.broadcast %5 : vector<1x8xf32> to vector<8x8xf32>
    %7 = arith.addf %4, %6 : vector<8x8xf32>
    %c0_7 = arith.constant 0 : index
    %c0_8 = arith.constant 0 : index
    %8 = vector.load %arg4[%c0_7, %c0_8] : memref<8x8xf32, #tpu.memory_space<vmem>>, vector<8x8xf32>
    tpu.vector_store %arg4[%c0_7, %c0_8], %7 {strides = array<i32>} : memref<8x8xf32, #tpu.memory_space<vmem>>, vector<8x8xf32>,
    return
  }
  func.func @transform_0(%arg0: i32) -> (i32, i32, i32) {
    %c0_i32 = arith.constant 0 : i32
    %c0_i32_0 = arith.constant 0 : i32
    %c0_i32_1 = arith.constant 0 : i32
    return %arg0, %c0_i32, %c0_i32_0 : i32, i32, i32
  }
  func.func @transform_1(%arg0: i32) -> (i32, i32, i32) {
    %c0_i32 = arith.constant 0 : i32
    %c0_i32_0 = arith.constant 0 : i32
    %c0_i32_1 = arith.constant 0 : i32
    %c0_i32_2 = arith.constant 0 : i32
    return %c0_i32, %c0_i32_0, %c0_i32_1 : i32, i32, i32
  }
  func.func @transform_2(%arg0: i32) -> (i32, i32) {
    %c0_i32 = arith.constant 0 : i32
    %c0_i32_0 = arith.constant 0 : i32
    %c0_i32_1 = arith.constant 0 : i32
    return %c0_i32, %c0_i32_0 : i32, i32
  }
  func.func @transform_3(%arg0: i32) -> (i32, i32) {
    %c0_i32 = arith.constant 0 : i32
    %c0_i32_0 = arith.constant 0 : i32
    return %arg0, %c0_i32 : i32, i32
  }
}

</mosaic_0001>

<llo_original>
// kernel: tpu_custom_call.1
$region0: #{tpu_custom_call.1}
  #allocation0 [shape = 'u32[]', space=smem, size = 0x4, offset = 0x4, fixed_abs, tag = 'smem constant byte address 0x4 - core index']
  #allocation1 [shape = 'u32[144,128]{1,0:T(1,128)}', space=vmem, size = 0x12000, scoped, tag = 'internal scratch']
  %s0 = inlined_call_operand.hbm [shape: f32[2,8,32], index: 0, kind: input, shape index: {}]
  %s1 = inlined_call_operand.hbm [shape: f32[1,8,32], index: 1, kind: input, shape index: {}]
  %s2 = inlined_call_operand.vmem [shape: f32[1,8], index: 2, kind: input, shape index: {}]
  %s3 = inlined_call_operand.hbm [shape: f32[2,8], index: 3, kind: output, shape index: {}]
  %s4 = sld [smem:[#allocation0]]
  $region30: #{tpu_custom_call.1} parent=0
    _
  %s6 = ssub.s32 1, %s4
  %s7 = scalar_select 0, %s6, %s4
  $region1: #{tpu_custom_call.1} parent=0
    #allocation2 [shape = 'u8[32768]{0}', space=vmem, size = 0x8000, scoped, tag = 'input window, operand 0, single buffered']
    #allocation3 [shape = 's32[1]{0}', space=sflag, size = 0x4, scoped, tag = 'scoped memory for tpu_custom_call.1']
    #allocation4 [shape = 's32[1]{0}', space=sflag, size = 0x4, scoped, tag = 'scoped memory for tpu_custom_call.1']
    #allocation5 [shape = 'u8[4096]{0}', space=vmem, size = 0x1000, scoped, tag = 'input window, operand 1, single buffered']
    #allocation6 [shape = 's32[1]{0}', space=sflag, size = 0x4, scoped, tag = 'scoped memory for tpu_custom_call.1']
    #allocation7 [shape = 'u8[4096]{0}', space=vmem, size = 0x1000, scoped, tag = 'output window, operand 0, single buffered']
    %8 = vsyncpa [#allocation3], 0
    %9 = vsyncpa [#allocation6], 0
    %10 = vsyncpa [#allocation4], 0
    // Predicated region
    $region2: #{tpu_custom_call.1} parent=1 // pred_check
      _
    $region3: #{tpu_custom_call.1} parent=1 // pred_check_branch
      %12 = sbr.rel (0) target = $region5
    $region4: #{tpu_custom_call.1} parent=1 // pred_region
      %s14 = ssub.s32 1024, 256
      %15 = vsyncadd [#allocation3], %s14
      %s16 = sshll.u32 [#allocation2], 4
      %s17 = int_to_ptr.vmem [resolvable:$true] %s16
      %22 = dma.hbm_to_vmem [thread:$0]  %s0, 256, %s17, [#allocation3], 128, 128, 8
    $region5: #{tpu_custom_call.1} parent=1 // pred_fallthru
      _
    // Predicated region
    $region6: #{tpu_custom_call.1} parent=1 // pred_check
      _
    $region7: #{tpu_custom_call.1} parent=1 // pred_check_branch
      %24 = sbr.rel (0) target = $region9
    $region8: #{tpu_custom_call.1} parent=1 // pred_region
      %s26 = ssub.s32 128, 128
      %27 = vsyncadd [#allocation6], %s26
      %s29 = sshll.u32 [#allocation5], 4
      %s30 = int_to_ptr.vmem [resolvable:$true] %s29
      %32 = dma.hbm_to_vmem [thread:$0]  %s1, 128, %s30, [#allocation6]
    $region9: #{tpu_custom_call.1} parent=1 // pred_fallthru
      _
    // Predicated region
    $region10: #{tpu_custom_call.1} parent=1 // pred_check
      _
    $region11: #{tpu_custom_call.1} parent=1 // pred_check_branch
      %34 = sbr.rel (0) target = $region13
    $region12: #{tpu_custom_call.1} parent=1 // pred_region
      _
    $region13: #{tpu_custom_call.1} parent=1 // pred_fallthru
      _
    // Predicated region
    $region14: #{tpu_custom_call.1} parent=1 // pred_check
      _
    $region15: #{tpu_custom_call.1} parent=1 // pred_check_branch
      %36 = sbr.rel (0) target = $region17
    $region16: #{tpu_custom_call.1} parent=1 // pred_region
      %37 = dma.done [#allocation3], 1024
    $region17: #{tpu_custom_call.1} parent=1 // pred_fallthru
      _
    // Predicated region
    $region18: #{tpu_custom_call.1} parent=1 // pred_check
      _
    $region19: #{tpu_custom_call.1} parent=1 // pred_check_branch
      %39 = sbr.rel (0) target = $region21
    $region20: #{tpu_custom_call.1} parent=1 // pred_region
      %40 = dma.done [#allocation6], 128
    $region21: #{tpu_custom_call.1} parent=1 // pred_fallthru
      _
    %v41 = vld [vmem:[#allocation2] sm:$0xff]
    %v42 = vld [vmem:[#allocation2 + $0x8] sm:$0xff]
    %v43 = vld [vmem:[#allocation2 + $0x10] sm:$0xff]
    %v44 = vld [vmem:[#allocation2 + $0x18] sm:$0xff]
    %v45 = vld [vmem:[#allocation2 + $0x20] sm:$0xff]
    %v46 = vld [vmem:[#allocation2 + $0x28] sm:$0xff]
    %v47 = vld [vmem:[#allocation2 + $0x30] sm:$0xff]
    %v48 = vld [vmem:[#allocation2 + $0x38] sm:$0xff]
    %v49 = vld [vmem:[#allocation5] sm:$0xff]
    %v50 = vmul.f32 %v41, %v49
    %v51 = vmul.f32 %v42, %v49
    %v52 = vmul.f32 %v43, %v49
    %v53 = vmul.f32 %v44, %v49
    %v54 = vmul.f32 %v45, %v49
    %v55 = vmul.f32 %v46, %v49
    %v56 = vmul.f32 %v47, %v49
    %v57 = vmul.f32 %v48, %v49
    %vm58 = vcmask 261120
    %v59 = vsel %vm58, %v50, 0.0
    %60 = vadd.xlane.f32.xlu0 %v59
    %v61 = vpop.xlane.xlu0 %60
    %v62 = vsel %vm58, %v51, 0.0
    %63 = vadd.xlane.f32.xlu0 %v62
    %v64 = vpop.xlane.xlu0 %63
    %v65 = vsel %vm58, %v52, 0.0
    %66 = vadd.xlane.f32.xlu0 %v65
    %v67 = vpop.xlane.xlu0 %66
    %v68 = vsel %vm58, %v53, 0.0
    %69 = vadd.xlane.f32.xlu0 %v68
    %v70 = vpop.xlane.xlu0 %69
    %v71 = vsel %vm58, %v54, 0.0
    %72 = vadd.xlane.f32.xlu0 %v71
    %v73 = vpop.xlane.xlu0 %72
    %v74 = vsel %vm58, %v55, 0.0
    %75 = vadd.xlane.f32.xlu0 %v74
    %v76 = vpop.xlane.xlu0 %75
    %v77 = vsel %vm58, %v56, 0.0
    %78 = vadd.xlane.f32.xlu0 %v77
    %v79 = vpop.xlane.xlu0 %78
    %v80 = vsel %vm58, %v57, 0.0
    %81 = vadd.xlane.f32.xlu0 %v80
    %v82 = vpop.xlane.xlu0 %81
    %v83 = vld [vmem:[%s2] sm:$0x1]
    %v85 = vlaneseq
    %v86 = vshrl.u32 %v85, 7
    %v87 = vsub.s32 0, %v86
    %v88 = vrot.slane %v83, %v87
    %90 = vbcast.lane.b32.xlu0 %v88, 256
    %v91 = vpop.permute.xlu0 %90
    %v93 = vadd.f32 %v61, %v91
    %v94 = vadd.f32 %v64, %v91
    %v95 = vadd.f32 %v67, %v91
    %v96 = vadd.f32 %v70, %v91
    %v97 = vadd.f32 %v73, %v91
    %v98 = vadd.f32 %v76, %v91
    %v99 = vadd.f32 %v79, %v91
    %v100 = vadd.f32 %v82, %v91
    %109 = vset.pattern.permute.xlu0 0
    %110 = vperm.xlu0 %109, %v93
    %v111 = vpop.permute.xlu0 %110
    %112 = vset.pattern.permute.xlu0 0
    %113 = vperm.xlu0 %112, %v94
    %v114 = vpop.permute.xlu0 %113
    %115 = vset.pattern.permute.xlu0 0
    %116 = vperm.xlu0 %115, %v95
    %v117 = vpop.permute.xlu0 %116
    %118 = vset.pattern.permute.xlu0 0
    %119 = vperm.xlu0 %118, %v96
    %v120 = vpop.permute.xlu0 %119
    %121 = vset.pattern.permute.xlu0 0
    %122 = vperm.xlu0 %121, %v97
    %v123 = vpop.permute.xlu0 %122
    %124 = vset.pattern.permute.xlu0 0
    %125 = vperm.xlu0 %124, %v98
    %v126 = vpop.permute.xlu0 %125
    %127 = vset.pattern.permute.xlu0 0
    %128 = vperm.xlu0 %127, %v99
    %v129 = vpop.permute.xlu0 %128
    %130 = vset.pattern.permute.xlu0 0
    %131 = vperm.xlu0 %130, %v100
    %v132 = vpop.permute.xlu0 %131
    %v133 = vlaneseq
    %v134 = vand.u32 %v133, 127
    %v135 = vlaneseq
    %v136 = vshrl.u32 %v135, 7
    %v137 = vsub.s32 %v134, %v136
    %v138 = vrot.slane %v111, %v137
    %v139 = vlaneseq
    %v140 = vshrl.u32 %v139, 7
    %v141 = vsub.s32 %v134, %v140
    %v142 = vrot.slane %v114, %v141
    %v143 = vlaneseq
    %v144 = vshrl.u32 %v143, 7
    %v145 = vsub.s32 %v134, %v144
    %v146 = vrot.slane %v117, %v145
    %v147 = vlaneseq
    %v148 = vshrl.u32 %v147, 7
    %v149 = vsub.s32 %v134, %v148
    %v150 = vrot.slane %v120, %v149
    %v151 = vlaneseq
    %v152 = vshrl.u32 %v151, 7
    %v153 = vsub.s32 %v134, %v152
    %v154 = vrot.slane %v123, %v153
    %v155 = vlaneseq
    %v156 = vshrl.u32 %v155, 7
    %v157 = vsub.s32 %v134, %v156
    %v158 = vrot.slane %v126, %v157
    %v159 = vlaneseq
    %v160 = vshrl.u32 %v159, 7
    %v161 = vsub.s32 %v134, %v160
    %v162 = vrot.slane %v129, %v161
    %v163 = vlaneseq
    %v164 = vshrl.u32 %v163, 7
    %v165 = vsub.s32 %v134, %v164
    %v166 = vrot.slane %v132, %v165
    %vm167 = vcmask 1041409
    %v168 = vsel %vm167, %v142, %v138
    %vm169 = vcmask 1042434
    %v170 = vsel %vm169, %v146, %v168
    %vm171 = vcmask 1043459
    %v172 = vsel %vm171, %v150, %v170
    %vm173 = vcmask 1044484
    %v174 = vsel %vm173, %v154, %v172
    %vm175 = vcmask 1045509
    %v176 = vsel %vm175, %v158, %v174
    %vm177 = vcmask 1046534
    %v178 = vsel %vm177, %v162, %v176
    %vm179 = vcmask 1047559
    %v180 = vsel %vm179, %v166, %v178
    %vm182 = vcmask 64512
    %183 = vst.msk [vmem:[#allocation7] sm:$0xff] %vm182, %v180
    // Predicated region
    $region22: #{tpu_custom_call.1} parent=1 // pred_check
      _
    $region23: #{tpu_custom_call.1} parent=1 // pred_check_branch
      %185 = sbr.rel (0) target = $region25
    $region24: #{tpu_custom_call.1} parent=1 // pred_region
      %s187 = ssub.s32 128, 32
      %188 = vsyncadd [#allocation4], %s187
      %s189 = sshll.u32 [#allocation7], 4
      %s190 = int_to_ptr.vmem [resolvable:$true] %s189
      %195 = dma.vmem_to_hbm [thread:$0]  %s190, 32, %s3, [#allocation4], 32, 32, 2
    $region25: #{tpu_custom_call.1} parent=1 // pred_fallthru
      _
    // Predicated region
    $region26: #{tpu_custom_call.1} parent=1 // pred_check
      _
    $region27: #{tpu_custom_call.1} parent=1 // pred_check_branch
      %197 = sbr.rel (0) target = $region29
    $region28: #{tpu_custom_call.1} parent=1 // pred_region
      %198 = dma.done [#allocation4], 128
    $region29: #{tpu_custom_call.1} parent=1 // pred_fallthru
      _
    %199 = vsyncpa [#allocation3], 1
    %200 = vsyncpa [#allocation6], 1
    %201 = vsyncpa [#allocation4], 1

// kernel: tpu_custom_call.1
$region0: #{tpu_custom_call.1}
  #allocation0 [shape = 'u32[]', space=smem, size = 0x4, offset = 0x4, fixed_abs, tag = 'smem constant byte address 0x4 - core index']
  #allocation1 [shape = 'u32[144,128]{1,0:T(1,128)}', space=vmem, size = 0x12000, scoped, tag = 'internal scratch']
  %s0 = inlined_call_operand.hbm [shape: f32[2,8,32], index: 0, kind: input, shape index: {}]
  %s1 = inlined_call_operand.hbm [shape: f32[1,8,32], index: 1, kind: input, shape index: {}]
  %s2 = inlined_call_operand.vmem [shape: f32[1,8], index: 2, kind: input, shape index: {}]
  %s3 = inlined_call_operand.hbm [shape: f32[2,8], index: 3, kind: output, shape index: {}]
  %s4 = sld [smem:[#allocation0]]
  $region30: #{tpu_custom_call.1} parent=0
    _
  %s6 = ssub.s32 1, %s4
  %s7 = scalar_select 0, %s6, %s4
  $region1: #{tpu_custom_call.1} parent=0
    #allocation2 [shape = 'u8[32768]{0}', space=vmem, size = 0x8000, scoped, tag = 'input window, operand 0, single buffered']
    #allocation3 [shape = 's32[1]{0}', space=sflag, size = 0x4, scoped, tag = 'scoped memory for tpu_custom_call.1']
    #allocation4 [shape = 's32[1]{0}', space=sflag, size = 0x4, scoped, tag = 'scoped memory for tpu_custom_call.1']
    #allocation5 [shape = 'u8[4096]{0}', space=vmem, size = 0x1000, scoped, tag = 'input window, operand 1, single buffered']
    #allocation6 [shape = 's32[1]{0}', space=sflag, size = 0x4, scoped, tag = 'scoped memory for tpu_custom_call.1']
    #allocation7 [shape = 'u8[4096]{0}', space=vmem, size = 0x1000, scoped, tag = 'output window, operand 0, single buffered']
    %8 = vsyncpa [#allocation3], 0
    %9 = vsyncpa [#allocation6], 0
    %10 = vsyncpa [#allocation4], 0
    // Predicated region
    $region2: #{tpu_custom_call.1} parent=1 // pred_check
      _
    $region3: #{tpu_custom_call.1} parent=1 // pred_check_branch
      %12 = sbr.rel (0) target = $region5
    $region4: #{tpu_custom_call.1} parent=1 // pred_region
      %s14 = ssub.s32 1024, 256
      %15 = vsyncadd [#allocation3], %s14
      %s16 = sshll.u32 [#allocation2], 4
      %s17 = int_to_ptr.vmem [resolvable:$true] %s16
      %22 = dma.hbm_to_vmem [thread:$0]  %s0, 256, %s17, [#allocation3], 128, 128, 8
    $region5: #{tpu_custom_call.1} parent=1 // pred_fallthru
      _
    // Predicated region
    $region6: #{tpu_custom_call.1} parent=1 // pred_check
      _
    $region7: #{tpu_custom_call.1} parent=1 // pred_check_branch
      %24 = sbr.rel (0) target = $region9
    $region8: #{tpu_custom_call.1} parent=1 // pred_region
      %s26 = ssub.s32 128, 128
      %27 = vsyncadd [#allocation6], %s26
      %s29 = sshll.u32 [#allocation5], 4
      %s30 = int_to_ptr.vmem [resolvable:$true] %s29
      %32 = dma.hbm_to_vmem [thread:$0]  %s1, 128, %s30, [#allocation6]
    $region9: #{tpu_custom_call.1} parent=1 // pred_fallthru
      _
    // Predicated region
    $region10: #{tpu_custom_call.1} parent=1 // pred_check
      _
    $region11: #{tpu_custom_call.1} parent=1 // pred_check_branch
      %34 = sbr.rel (0) target = $region13
    $region12: #{tpu_custom_call.1} parent=1 // pred_region
      _
    $region13: #{tpu_custom_call.1} parent=1 // pred_fallthru
      _
    // Predicated region
    $region14: #{tpu_custom_call.1} parent=1 // pred_check
      _
    $region15: #{tpu_custom_call.1} parent=1 // pred_check_branch
      %36 = sbr.rel (0) target = $region17
    $region16: #{tpu_custom_call.1} parent=1 // pred_region
      %37 = dma.done [#allocation3], 1024
    $region17: #{tpu_custom_call.1} parent=1 // pred_fallthru
      _
    // Predicated region
    $region18: #{tpu_custom_call.1} parent=1 // pred_check
      _
    $region19: #{tpu_custom_call.1} parent=1 // pred_check_branch
      %39 = sbr.rel (0) target = $region21
    $region20: #{tpu_custom_call.1} parent=1 // pred_region
      %40 = dma.done [#allocation6], 128
    $region21: #{tpu_custom_call.1} parent=1 // pred_fallthru
      _
    %v41 = vld [vmem:[#allocation2] sm:$0xff]
    %v42 = vld [vmem:[#allocation2 + $0x8] sm:$0xff]
    %v43 = vld [vmem:[#allocation2 + $0x10] sm:$0xff]
    %v44 = vld [vmem:[#allocation2 + $0x18] sm:$0xff]
    %v45 = vld [vmem:[#allocation2 + $0x20] sm:$0xff]
    %v46 = vld [vmem:[#allocation2 + $0x28] sm:$0xff]
    %v47 = vld [vmem:[#allocation2 + $0x30] sm:$0xff]
    %v48 = vld [vmem:[#allocation2 + $0x38] sm:$0xff]
    %v49 = vld [vmem:[#allocation5] sm:$0xff]
    %v50 = vmul.f32 %v41, %v49
    %v51 = vmul.f32 %v42, %v49
    %v52 = vmul.f32 %v43, %v49
    %v53 = vmul.f32 %v44, %v49
    %v54 = vmul.f32 %v45, %v49
    %v55 = vmul.f32 %v46, %v49
    %v56 = vmul.f32 %v47, %v49
    %v57 = vmul.f32 %v48, %v49
    %vm58 = vcmask 261120
    %v59 = vsel %vm58, %v50, 0.0
    %60 = vadd.xlane.f32.xlu0 %v59
    %v61 = vpop.xlane.xlu0 %60
    %v62 = vsel %vm58, %v51, 0.0
    %63 = vadd.xlane.f32.xlu0 %v62
    %v64 = vpop.xlane.xlu0 %63
    %v65 = vsel %vm58, %v52, 0.0
    %66 = vadd.xlane.f32.xlu0 %v65
    %v67 = vpop.xlane.xlu0 %66
    %v68 = vsel %vm58, %v53, 0.0
    %69 = vadd.xlane.f32.xlu0 %v68
    %v70 = vpop.xlane.xlu0 %69
    %v71 = vsel %vm58, %v54, 0.0
    %72 = vadd.xlane.f32.xlu0 %v71
    %v73 = vpop.xlane.xlu0 %72
    %v74 = vsel %vm58, %v55, 0.0
    %75 = vadd.xlane.f32.xlu0 %v74
    %v76 = vpop.xlane.xlu0 %75
    %v77 = vsel %vm58, %v56, 0.0
    %78 = vadd.xlane.f32.xlu0 %v77
    %v79 = vpop.xlane.xlu0 %78
    %v80 = vsel %vm58, %v57, 0.0
    %81 = vadd.xlane.f32.xlu0 %v80
    %v82 = vpop.xlane.xlu0 %81
    %v83 = vld [vmem:[%s2] sm:$0x1]
    %v85 = vlaneseq
    %v86 = vshrl.u32 %v85, 7
    %v87 = vsub.s32 0, %v86
    %v88 = vrot.slane %v83, %v87
    %90 = vbcast.lane.b32.xlu0 %v88, 256
    %v91 = vpop.permute.xlu0 %90
    %v93 = vadd.f32 %v61, %v91
    %v94 = vadd.f32 %v64, %v91
    %v95 = vadd.f32 %v67, %v91
    %v96 = vadd.f32 %v70, %v91
    %v97 = vadd.f32 %v73, %v91
    %v98 = vadd.f32 %v76, %v91
    %v99 = vadd.f32 %v79, %v91
    %v100 = vadd.f32 %v82, %v91
    %109 = vset.pattern.permute.xlu0 0
    %110 = vperm.xlu0 %109, %v93
    %v111 = vpop.permute.xlu0 %110
    %112 = vset.pattern.permute.xlu0 0
    %113 = vperm.xlu0 %112, %v94
    %v114 = vpop.permute.xlu0 %113
    %115 = vset.pattern.permute.xlu0 0
    %116 = vperm.xlu0 %115, %v95
    %v117 = vpop.permute.xlu0 %116
    %118 = vset.pattern.permute.xlu0 0
    %119 = vperm.xlu0 %118, %v96
    %v120 = vpop.permute.xlu0 %119
    %121 = vset.pattern.permute.xlu0 0
    %122 = vperm.xlu0 %121, %v97
    %v123 = vpop.permute.xlu0 %122
    %124 = vset.pattern.permute.xlu0 0
    %125 = vperm.xlu0 %124, %v98
    %v126 = vpop.permute.xlu0 %125
    %127 = vset.pattern.permute.xlu0 0
    %128 = vperm.xlu0 %127, %v99
    %v129 = vpop.permute.xlu0 %128
    %130 = vset.pattern.permute.xlu0 0
    %131 = vperm.xlu0 %130, %v100
    %v132 = vpop.permute.xlu0 %131
    %v133 = vlaneseq
    %v134 = vand.u32 %v133, 127
    %v135 = vlaneseq
    %v136 = vshrl.u32 %v135, 7
    %v137 = vsub.s32 %v134, %v136
    %v138 = vrot.slane %v111, %v137
    %v139 = vlaneseq
    %v140 = vshrl.u32 %v139, 7
    %v141 = vsub.s32 %v134, %v140
    %v142 = vrot.slane %v114, %v141
    %v143 = vlaneseq
    %v144 = vshrl.u32 %v143, 7
    %v145 = vsub.s32 %v134, %v144
    %v146 = vrot.slane %v117, %v145
    %v147 = vlaneseq
    %v148 = vshrl.u32 %v147, 7
    %v149 = vsub.s32 %v134, %v148
    %v150 = vrot.slane %v120, %v149
    %v151 = vlaneseq
    %v152 = vshrl.u32 %v151, 7
    %v153 = vsub.s32 %v134, %v152
    %v154 = vrot.slane %v123, %v153
    %v155 = vlaneseq
    %v156 = vshrl.u32 %v155, 7
    %v157 = vsub.s32 %v134, %v156
    %v158 = vrot.slane %v126, %v157
    %v159 = vlaneseq
    %v160 = vshrl.u32 %v159, 7
    %v161 = vsub.s32 %v134, %v160
    %v162 = vrot.slane %v129, %v161
    %v163 = vlaneseq
    %v164 = vshrl.u32 %v163, 7
    %v165 = vsub.s32 %v134, %v164
    %v166 = vrot.slane %v132, %v165
    %vm167 = vcmask 1041409
    %v168 = vsel %vm167, %v142, %v138
    %vm169 = vcmask 1042434
    %v170 = vsel %vm169, %v146, %v168
    %vm171 = vcmask 1043459
    %v172 = vsel %vm171, %v150, %v170
    %vm173 = vcmask 1044484
    %v174 = vsel %vm173, %v154, %v172
    %vm175 = vcmask 1045509
    %v176 = vsel %vm175, %v158, %v174
    %vm177 = vcmask 1046534
    %v178 = vsel %vm177, %v162, %v176
    %vm179 = vcmask 1047559
    %v180 = vsel %vm179, %v166, %v178
    %vm182 = vcmask 64512
    %183 = vst.msk [vmem:[#allocation7] sm:$0xff] %vm182, %v180
    // Predicated region
    $region22: #{tpu_custom_call.1} parent=1 // pred_check
      _
    $region23: #{tpu_custom_call.1} parent=1 // pred_check_branch
      %185 = sbr.rel (0) target = $region25
    $region24: #{tpu_custom_call.1} parent=1 // pred_region
      %s187 = ssub.s32 128, 32
      %188 = vsyncadd [#allocation4], %s187
      %s189 = sshll.u32 [#allocation7], 4
      %s190 = int_to_ptr.vmem [resolvable:$true] %s189
      %195 = dma.vmem_to_hbm [thread:$0]  %s190, 32, %s3, [#allocation4], 32, 32, 2
    $region25: #{tpu_custom_call.1} parent=1 // pred_fallthru
      _
    // Predicated region
    $region26: #{tpu_custom_call.1} parent=1 // pred_check
      _
    $region27: #{tpu_custom_call.1} parent=1 // pred_check_branch
      %197 = sbr.rel (0) target = $region29
    $region28: #{tpu_custom_call.1} parent=1 // pred_region
      %198 = dma.done [#allocation4], 128
    $region29: #{tpu_custom_call.1} parent=1 // pred_fallthru
      _
    %199 = vsyncpa [#allocation3], 1
    %200 = vsyncpa [#allocation6], 1
    %201 = vsyncpa [#allocation4], 1

</llo_original>
